<compile_context>
chip_gen: v7x
topology: tpu7x:2x2x1
jax: 0.10.0
libtpu: 0.0.40
codegen_flags: <defaults>
</compile_context>

<pallas_src>
import math
import jax
import jax.numpy as jnp
from jax.experimental import pallas as pl
from jax.experimental.pallas import tpu as pltpu


def _make_ct_attention_kernel(max_future_length: int, q_tile: int, seq_len: int):
    def kernel(x_ref, am_ref, wq_ref, bq_ref, k_ref, v_ref, ctx_ref, probs_ref):
        qi = pl.program_id(2)

        # Q projection for this (head, query tile); 1/sqrt(Dh) pre-folded into wq/bq.
        q_start = pl.multiple_of(qi * q_tile, q_tile)
        xq = x_ref[0, pl.ds(q_start, q_tile), :]                        # (TQ, D) bf16
        q = jnp.dot(xq, wq_ref[0], preferred_element_type=jnp.float32) + bq_ref[0]
        q = q.astype(jnp.bfloat16)                                      # (TQ, Dh)

        kh = k_ref[0, 0]                                                # (S, Dh) bf16
        vh = v_ref[0, 0]                                                # (S, Dh) bf16

        # Q . K^T without an explicit transpose (contract the last dims).
        dn = (((1,), (1,)), ((), ()))
        scores = jax.lax.dot_general(q, kh, dn,
                                     preferred_element_type=jnp.float32)  # (TQ, S)

        # Fused causal-with-lookahead mask + key padding mask (Python-scalar fill).
        row = jax.lax.broadcasted_iota(jnp.int32, (q_tile, seq_len), 0) + qi * q_tile
        col = jax.lax.broadcasted_iota(jnp.int32, (q_tile, seq_len), 1)
        keep = jnp.logical_and((col - max_future_length) <= row,
                               am_ref[0] != 0.0)                        # (TQ, S)
        scores = jnp.where(keep, scores, -1e20)

        # Numerically stable softmax over keys (f32); reciprocal on the EUP slot.
        m = jnp.max(scores, axis=-1, keepdims=True)
        e = jnp.exp(scores - m)
        inv_l = pl.reciprocal(jnp.sum(e, axis=-1, keepdims=True), approx=True)
        p = e * inv_l

        # TODO(synk): dropout on attention_probs skipped (eval mode / p == 0).
        probs_ref[0, 0] = p.astype(probs_ref.dtype)
        ctx_ref[0, 0] = jnp.dot(p.astype(jnp.bfloat16), vh,
                                preferred_element_type=jnp.float32
                                ).astype(ctx_ref.dtype)

    return kernel


def ct_self_attention(hidden_states, attention_mask, params,
                      num_attention_heads: int, max_future_length: int,
                      q_block: int = 128, probs_dtype=jnp.float32):
    """Pallas forward pass of CTSelfAttention. Returns (context_layer, attention_probs)."""
    B, S, D = hidden_states.shape
    H = num_attention_heads
    Dh = D // H
    wq, bq, wk, bk, wv, bv = params

    # Query-tile size / padded sequence length. Realistic S is padded up to a
    # multiple of q_block (128; 256 is worth trying on v6e); tiny sequences use a
    # single full-extent tile.
    if S >= q_block:
        TQ = q_block
        Sp = int(pl.cdiv(S, TQ)) * TQ
    else:
        TQ = S
        Sp = S
    NQ = Sp // TQ
    pad = Sp - S

    x = hidden_states
    am = attention_mask
    if pad:
        x = jnp.pad(x, ((0, 0), (0, pad), (0, 0)))
        am = jnp.pad(am, ((0, 0), (0, pad)))          # padded keys are masked out

    inv_scale = 1.0 / math.sqrt(Dh)

    xb = x.astype(jnp.bfloat16)                        # (B, Sp, D)
    am3 = am.reshape(B, 1, Sp).astype(jnp.float32)     # (B, 1, Sp)

    # Fold 1/sqrt(Dh) into the query projection; per-head weight layout (H, D, Dh)
    # so the head dim never lands on the lane axis inside the kernel.
    wq_h = (wq * inv_scale).reshape(D, H, Dh).transpose(1, 0, 2).astype(jnp.bfloat16)
    bq_h = (bq * inv_scale).reshape(H, 1, Dh).astype(jnp.float32)

    # K/V projections for the whole (padded) sequence as plain XLA matmuls, so the
    # kernel grid has no scratch-initialization dependency and all axes are parallel.
    xf = x.astype(jnp.float32)
    k_all = (xf @ wk.astype(jnp.float32) + bk).reshape(B, Sp, H, Dh)
    v_all = (xf @ wv.astype(jnp.float32) + bv).reshape(B, Sp, H, Dh)
    k_all = k_all.transpose(0, 2, 1, 3).astype(jnp.bfloat16)   # (B, H, Sp, Dh)
    v_all = v_all.transpose(0, 2, 1, 3).astype(jnp.bfloat16)   # (B, H, Sp, Dh)

    kernel = _make_ct_attention_kernel(max_future_length, TQ, Sp)

    probs_bytes = jnp.dtype(probs_dtype).itemsize
    flops = 2 * B * Sp * D * D + 4 * B * Sp * Sp * D           # Q proj + QK^T + PV
    transcendentals = B * H * Sp * Sp                          # exp in softmax
    bytes_accessed = (B * Sp * D * 2                           # x
                      + 2 * B * Sp * D * 2                     # K, V
                      + H * D * Dh * 2 + H * Dh * 4            # Wq, bq
                      + B * Sp * 4                             # mask
                      + B * Sp * D * 4                         # context
                      + B * H * Sp * Sp * probs_bytes)         # probs writeback

    ctx_heads, probs = pl.pallas_call(
        kernel,
        out_shape=(
            jax.ShapeDtypeStruct((B, H, Sp, Dh), jnp.float32),
            jax.ShapeDtypeStruct((B, H, Sp, Sp), probs_dtype),
        ),
        grid_spec=pltpu.PrefetchScalarGridSpec(
            num_scalar_prefetch=0,
            grid=(B, H, NQ),
            in_specs=[
                pl.BlockSpec((1, Sp, D), lambda b, h, qi: (b, 0, 0)),         # x (resident per b)
                pl.BlockSpec((1, 1, Sp), lambda b, h, qi: (b, 0, 0)),         # attention_mask
                pl.BlockSpec((1, D, Dh), lambda b, h, qi: (h, 0, 0)),         # Wq[h]
                pl.BlockSpec((1, 1, Dh), lambda b, h, qi: (h, 0, 0)),         # bq[h]
                pl.BlockSpec((1, 1, Sp, Dh), lambda b, h, qi: (b, h, 0, 0)),  # K[b,h] (resident per b,h)
                pl.BlockSpec((1, 1, Sp, Dh), lambda b, h, qi: (b, h, 0, 0)),  # V[b,h]
            ],
            out_specs=[
                pl.BlockSpec((1, 1, TQ, Dh), lambda b, h, qi: (b, h, qi, 0)),  # context (per head)
                pl.BlockSpec((1, 1, TQ, Sp), lambda b, h, qi: (b, h, qi, 0)),  # probs (per head)
            ],
        ),
        compiler_params=pltpu.CompilerParams(
            dimension_semantics=("parallel", "parallel", "parallel"),
            vmem_limit_bytes=48 * 1024 * 1024),
        cost_estimate=pl.CostEstimate(flops=flops,
                                      transcendentals=transcendentals,
                                      bytes_accessed=bytes_accessed),
    )(xb, am3, wq_h, bq_h, k_all, v_all)

    # [B, H, Sp, Dh] -> [B, Sp, D]; crop the padded rows / columns.
    ctx = ctx_heads.transpose(0, 2, 1, 3).reshape(B, Sp, D)
    if pad:
        ctx = ctx[:, :S, :]
        probs = probs[:, :, :S, :S]
    return ctx, probs


def _reference(hidden_states, attention_mask, params, num_heads, max_future_length):
    """Pure-JAX (f32) replica of the PyTorch forward, for verification."""
    B, S, D = hidden_states.shape
    Dh = D // num_heads
    wq, bq, wk, bk, wv, bv = params

    def split_heads(t):  # [B,S,D] -> [B,H,S,Dh]
        return t.reshape(B, S, num_heads, Dh).transpose(0, 2, 1, 3)

    q = split_heads(hidden_states @ wq + bq)
    k = split_heads(hidden_states @ wk + bk)
    v = split_heads(hidden_states @ wv + bv)

    attn = jnp.einsum("bhqd,bhkd->bhqk", q, k)
    i = jnp.arange(S)[:, None]
    j = jnp.arange(S)[None, :]
    ct_keep = (j - max_future_length) <= i                       # [S, S]
    attn = jnp.where(ct_keep[None, None], attn, -1e20)
    pad_keep = (attention_mask != 0)[:, None, None, :]           # [B,1,1,S]
    attn = jnp.where(pad_keep, attn, -1e20)
    attn = attn / math.sqrt(Dh)
    probs = jax.nn.softmax(attn, axis=-1)
    ctx = jnp.einsum("bhqk,bhkd->bhqd", probs, v)
    ctx = ctx.transpose(0, 2, 1, 3).reshape(B, S, D)
    return ctx, probs


if __name__ == "__main__":
    # config: d_model=32, num_attention_heads=4, max_future_length=2
    B, S, D, H = 2, 8, 32, 4
    max_future_length = 2

    key = jax.random.PRNGKey(0)
    k_x, k_wq, k_bq, k_wk, k_bk, k_wv, k_bv = jax.random.split(key, 7)

    hidden_states = jax.random.normal(k_x, (B, S, D), dtype=jnp.float32)
    # padding mask: last two positions of batch 1 are padding
    attention_mask = jnp.ones((B, S), dtype=jnp.float32).at[1, -2:].set(0.0)

    scale = 1.0 / math.sqrt(D)
    params = (
        jax.random.normal(k_wq, (D, D), dtype=jnp.float32) * scale,
        jax.random.normal(k_bq, (D,), dtype=jnp.float32) * 0.1,
        jax.random.normal(k_wk, (D, D), dtype=jnp.float32) * scale,
        jax.random.normal(k_bk, (D,), dtype=jnp.float32) * 0.1,
        jax.random.normal(k_wv, (D, D), dtype=jnp.float32) * scale,
        jax.random.normal(k_bv, (D,), dtype=jnp.float32) * 0.1,
    )

    ctx, probs = ct_self_attention(hidden_states, attention_mask, params, H, max_future_length)
    ctx = jax.block_until_ready(ctx)
    probs = jax.block_until_ready(probs)

    ref_ctx, ref_probs = _reference(hidden_states, attention_mask, params, H, max_future_length)
    assert ctx.shape == (B, S, D) and probs.shape == (B, H, S, S)
    # bf16 matmul inputs + approx reciprocal -> compare against the f32 reference
    # with a correspondingly loosened tolerance.
    assert jnp.allclose(ctx, ref_ctx, atol=5e-2, rtol=5e-2)
    assert jnp.allclose(probs, ref_probs, atol=5e-2, rtol=5e-2)

    print("KERNEL_OK")
</pallas_src>

<mosaic_0001>
module attributes {stable_mosaic.version = 11 : i64} {
  func.func @kernel(%arg0: i32, %arg1: i32, %arg2: i32, %arg3: memref<1x8x32xbf16, #tpu.memory_space<vmem>>, %arg4: memref<1x1x8xf32, #tpu.memory_space<vmem>>, %arg5: memref<1x32x8xbf16, #tpu.memory_space<vmem>>, %arg6: memref<1x1x8xf32, #tpu.memory_space<vmem>>, %arg7: memref<1x1x8x8xbf16, #tpu.memory_space<vmem>>, %arg8: memref<1x1x8x8xbf16, #tpu.memory_space<vmem>>, %arg9: memref<1x1x8x8xf32, #tpu.memory_space<vmem>>, %arg10: memref<1x1x8x8xf32, #tpu.memory_space<vmem>>) attributes {dimension_semantics = [#tpu.dimension_semantics<parallel>, #tpu.dimension_semantics<parallel>, #tpu.dimension_semantics<parallel>], iteration_bounds = array<i64: 2, 4, 1>, scalar_prefetch = 0 : i64, scratch_operands = 0 : i64, tpu.core_type = #tpu.core_type<tc>, window_params = [{transform_indices = @transform_0, window_bounds = array<i64: 1, 8, 32>}, {transform_indices = @transform_1, window_bounds = array<i64: 1, 1, 8>}, {transform_indices = @transform_2, window_bounds = array<i64: 1, 32, 8>}, {transform_indices = @transform_3, window_bounds = array<i64: 1, 1, 8>}, {transform_indices = @transform_4, window_bounds = array<i64: 1, 1, 8, 8>}, {transform_indices = @transform_5, window_bounds = array<i64: 1, 1, 8, 8>}, {transform_indices = @transform_6, window_bounds = array<i64: 1, 1, 8, 8>}, {transform_indices = @transform_7, window_bounds = array<i64: 1, 1, 8, 8>}]} {
    %c8_i32 = arith.constant 8 : i32
    %0 = arith.muli %arg2, %c8_i32 : i32
    %1 = tpu.assume_multiple %0, 8 : i32
    %c0 = arith.constant 0 : index
    %2 = arith.index_cast %1 : i32 to index
    %c0_0 = arith.constant 0 : index
    %3 = vector.load %arg3[%c0, %2, %c0_0] : memref<1x8x32xbf16, #tpu.memory_space<vmem>>, vector<1x8x32xbf16>
    %4 = vector.shape_cast %3 : vector<1x8x32xbf16> to vector<8x32xbf16>
    %c0_1 = arith.constant 0 : index
    %c0_2 = arith.constant 0 : index
    %c0_3 = arith.constant 0 : index
    %5 = vector.load %arg5[%c0_1, %c0_2, %c0_3] : memref<1x32x8xbf16, #tpu.memory_space<vmem>>, vector<1x32x8xbf16>
    %6 = vector.shape_cast %5 : vector<1x32x8xbf16> to vector<32x8xbf16>
    %cst = arith.constant dense<0.000000e+00> : vector<8x8xf32>
    %7 = tpu.matmul %4, %6, %cst {dimension_numbers = #tpu.dot_dimension_numbers<[1], [0], [0], [1], [0, 0, 1, 1], [], []>} : vector<8x32xbf16>, vector<32x8xbf16>, vector<8x8xf32> -> vector<8x8xf32>
    %c0_4 = arith.constant 0 : index
    %c0_5 = arith.constant 0 : index
    %c0_6 = arith.constant 0 : index
    %8 = vector.load %arg6[%c0_4, %c0_5, %c0_6] : memref<1x1x8xf32, #tpu.memory_space<vmem>>, vector<1x1x8xf32>
    %9 = vector.shape_cast %8 : vector<1x1x8xf32> to vector<1x8xf32>
    %10 = vector.broadcast %9 : vector<1x8xf32> to vector<8x8xf32>
    %11 = arith.addf %7, %10 : vector<8x8xf32>
    %12 = arith.truncf %11 : vector<8x8xf32> to vector<8x8xbf16>
    %c0_7 = arith.constant 0 : index
    %c0_8 = arith.constant 0 : index
    %c0_9 = arith.constant 0 : index
    %c0_10 = arith.constant 0 : index
    %13 = vector.load %arg7[%c0_7, %c0_8, %c0_9, %c0_10] : memref<1x1x8x8xbf16, #tpu.memory_space<vmem>>, vector<1x1x8x8xbf16>
    %14 = vector.shape_cast %13 : vector<1x1x8x8xbf16> to vector<8x8xbf16>
    %c0_11 = arith.constant 0 : index
    %c0_12 = arith.constant 0 : index
    %c0_13 = arith.constant 0 : index
    %c0_14 = arith.constant 0 : index
    %15 = vector.load %arg8[%c0_11, %c0_12, %c0_13, %c0_14] : memref<1x1x8x8xbf16, #tpu.memory_space<vmem>>, vector<1x1x8x8xbf16>
    %16 = vector.shape_cast %15 : vector<1x1x8x8xbf16> to vector<8x8xbf16>
    %cst_15 = arith.constant dense<0.000000e+00> : vector<8x8xf32>
    %17 = tpu.matmul %12, %14, %cst_15 {dimension_numbers = #tpu.dot_dimension_numbers<[1], [1], [0], [0], [0, 0, 1, 0], [], []>} : vector<8x8xbf16>, vector<8x8xbf16>, vector<8x8xf32> -> vector<8x8xf32>
    %18 = tpu.iota {dimensions = array<i32: 0>} : vector<8x8xi32>
    %c8_i32_16 = arith.constant 8 : i32
    %19 = arith.muli %arg2, %c8_i32_16 : i32
    %20 = vector.broadcast %19 : i32 to vector<8x8xi32>
    %21 = arith.addi %18, %20 : vector<8x8xi32>
    %22 = tpu.iota {dimensions = array<i32: 1>} : vector<8x8xi32>
    %c2_i32 = arith.constant 2 : i32
    %23 = vector.broadcast %c2_i32 : i32 to vector<8x8xi32>
    %24 = arith.subi %22, %23 : vector<8x8xi32>
    %25 = arith.cmpi sle, %24, %21 : vector<8x8xi32>
    %c0_17 = arith.constant 0 : index
    %c0_18 = arith.constant 0 : index
    %c0_19 = arith.constant 0 : index
    %26 = vector.load %arg4[%c0_17, %c0_18, %c0_19] : memref<1x1x8xf32, #tpu.memory_space<vmem>>, vector<1x1x8xf32>
    %27 = vector.shape_cast %26 : vector<1x1x8xf32> to vector<1x8xf32>
    %cst_20 = arith.constant 0.000000e+00 : f32
    %28 = vector.broadcast %cst_20 : f32 to vector<1x8xf32>
    %29 = arith.cmpf one, %27, %28 : vector<1x8xf32>
    %30 = vector.broadcast %29 : vector<1x8xi1> to vector<8x8xi1>
    %31 = arith.andi %25, %30 : vector<8x8xi1>
    %cst_21 = arith.constant -1.000000e+20 : f32
    %32 = vector.broadcast %cst_21 : f32 to vector<8x8xf32>
    %33 = arith.select %31, %17, %32 : vector<8x8xi1>, vector<8x8xf32>
    %cst_22 = arith.constant dense<0xFF800000> : vector<8xf32>
    %34 = vector.multi_reduction <maximumf>, %33, %cst_22 [1] : vector<8x8xf32> to vector<8xf32>
    %35 = vector.shape_cast %34 : vector<8xf32> to vector<8x1xf32>
    %36 = vector.broadcast %35 : vector<8x1xf32> to vector<8x8xf32>
    %37 = arith.subf %33, %36 : vector<8x8xf32>
    %38 = math.exp %37 : vector<8x8xf32>
    %cst_23 = arith.constant dense<0.000000e+00> : vector<8xf32>
    %39 = vector.multi_reduction <add>, %38, %cst_23 [1] : vector<8x8xf32> to vector<8xf32>
    %40 = vector.shape_cast %39 : vector<8xf32> to vector<8x1xf32>
    %41 = tpu.reciprocal %40 {approx = true} : vector<8x1xf32> -> vector<8x1xf32>
    %42 = vector.broadcast %41 : vector<8x1xf32> to vector<8x8xf32>
    %43 = arith.mulf %38, %42 : vector<8x8xf32>
    %c0_24 = arith.constant 0 : index
    %c0_25 = arith.constant 0 : index
    %c0_26 = arith.constant 0 : index
    %c0_27 = arith.constant 0 : index
    %44 = vector.load %arg10[%c0_24, %c0_25, %c0_26, %c0_27] : memref<1x1x8x8xf32, #tpu.memory_space<vmem>>, vector<1x1x8x8xf32>
    %45 = vector.shape_cast %44 : vector<1x1x8x8xf32> to vector<8x8xf32>
    %46 = vector.shape_cast %43 : vector<8x8xf32> to vector<1x1x8x8xf32>
    tpu.vector_store %arg10[%c0_24, %c0_25, %c0_26, %c0_27], %46 {strides = array<i32>} : memref<1x1x8x8xf32, #tpu.memory_space<vmem>>, vector<1x1x8x8xf32>,
    %47 = arith.truncf %43 : vector<8x8xf32> to vector<8x8xbf16>
    %cst_28 = arith.constant dense<0.000000e+00> : vector<8x8xf32>
    %48 = tpu.matmul %47, %16, %cst_28 {dimension_numbers = #tpu.dot_dimension_numbers<[1], [0], [0], [1], [0, 0, 1, 1], [], []>} : vector<8x8xbf16>, vector<8x8xbf16>, vector<8x8xf32> -> vector<8x8xf32>
    %c0_29 = arith.constant 0 : index
    %c0_30 = arith.constant 0 : index
    %c0_31 = arith.constant 0 : index
    %c0_32 = arith.constant 0 : index
    %49 = vector.load %arg9[%c0_29, %c0_30, %c0_31, %c0_32] : memref<1x1x8x8xf32, #tpu.memory_space<vmem>>, vector<1x1x8x8xf32>
    %50 = vector.shape_cast %49 : vector<1x1x8x8xf32> to vector<8x8xf32>
    %51 = vector.shape_cast %48 : vector<8x8xf32> to vector<1x1x8x8xf32>
    tpu.vector_store %arg9[%c0_29, %c0_30, %c0_31, %c0_32], %51 {strides = array<i32>} : memref<1x1x8x8xf32, #tpu.memory_space<vmem>>, vector<1x1x8x8xf32>,
    return
  }
  func.func @transform_0(%arg0: i32, %arg1: i32, %arg2: i32) -> (i32, i32, i32) {
    %c0_i32 = arith.constant 0 : i32
    %c0_i32_0 = arith.constant 0 : i32
    %c0_i32_1 = arith.constant 0 : i32
    return %arg0, %c0_i32, %c0_i32_0 : i32, i32, i32
  }
  func.func @transform_1(%arg0: i32, %arg1: i32, %arg2: i32) -> (i32, i32, i32) {
    %c0_i32 = arith.constant 0 : i32
    %c0_i32_0 = arith.constant 0 : i32
    %c0_i32_1 = arith.constant 0 : i32
    return %arg0, %c0_i32, %c0_i32_0 : i32, i32, i32
  }
  func.func @transform_2(%arg0: i32, %arg1: i32, %arg2: i32) -> (i32, i32, i32) {
    %c0_i32 = arith.constant 0 : i32
    %c0_i32_0 = arith.constant 0 : i32
    %c0_i32_1 = arith.constant 0 : i32
    return %arg1, %c0_i32, %c0_i32_0 : i32, i32, i32
  }
  func.func @transform_3(%arg0: i32, %arg1: i32, %arg2: i32) -> (i32, i32, i32) {
    %c0_i32 = arith.constant 0 : i32
    %c0_i32_0 = arith.constant 0 : i32
    %c0_i32_1 = arith.constant 0 : i32
    return %arg1, %c0_i32, %c0_i32_0 : i32, i32, i32
  }
  func.func @transform_4(%arg0: i32, %arg1: i32, %arg2: i32) -> (i32, i32, i32, i32) {
    %c0_i32 = arith.constant 0 : i32
    %c0_i32_0 = arith.constant 0 : i32
    %c0_i32_1 = arith.constant 0 : i32
    return %arg0, %arg1, %c0_i32, %c0_i32_0 : i32, i32, i32, i32
  }
  func.func @transform_5(%arg0: i32, %arg1: i32, %arg2: i32) -> (i32, i32, i32, i32) {
    %c0_i32 = arith.constant 0 : i32
    %c0_i32_0 = arith.constant 0 : i32
    %c0_i32_1 = arith.constant 0 : i32
    return %arg0, %arg1, %c0_i32, %c0_i32_0 : i32, i32, i32, i32
  }
  func.func @transform_6(%arg0: i32, %arg1: i32, %arg2: i32) -> (i32, i32, i32, i32) {
    %c0_i32 = arith.constant 0 : i32
    %c0_i32_0 = arith.constant 0 : i32
    return %arg0, %arg1, %arg2, %c0_i32 : i32, i32, i32, i32
  }
  func.func @transform_7(%arg0: i32, %arg1: i32, %arg2: i32) -> (i32, i32, i32, i32) {
    %c0_i32 = arith.constant 0 : i32
    %c0_i32_0 = arith.constant 0 : i32
    return %arg0, %arg1, %arg2, %c0_i32 : i32, i32, i32, i32
  }
}

</mosaic_0001>

<llo_original>
// kernel: tpu_custom_call.1
$region0: #{tpu_custom_call.1}
  #allocation0 [shape = 'u32[]', space=smem, size = 0x4, offset = 0x4, fixed_abs, tag = 'smem constant byte address 0x4 - core index']
  #allocation1 [shape = 'u32[144,128]{1,0:T(1,128)}', space=vmem, size = 0x12000, scoped, tag = 'internal scratch']
  %s0 = inlined_call_operand.vmem [shape: bf16[2,8,32], index: 0, kind: input, shape index: {}]
  %s1 = inlined_call_operand.vmem [shape: f32[2,1,8], index: 1, kind: input, shape index: {}]
  %s2 = inlined_call_operand.vmem [shape: bf16[4,32,8], index: 2, kind: input, shape index: {}]
  %s3 = inlined_call_operand.vmem [shape: f32[4,1,8], index: 3, kind: input, shape index: {}]
  %s4 = inlined_call_operand.vmem [shape: bf16[2,4,8,8], index: 4, kind: input, shape index: {}]
  %s5 = inlined_call_operand.vmem [shape: bf16[2,4,8,8], index: 5, kind: input, shape index: {}]
  %s6 = inlined_call_operand.hbm [shape: f32[2,4,8,8], index: 6, kind: output, shape index: {0}]
  %s7 = inlined_call_operand.hbm [shape: f32[2,4,8,8], index: 7, kind: output, shape index: {1}]
  %8 = xla_tuple %s6, %s7
  %s9 = sld [smem:[#allocation0]]
  $region65: #{tpu_custom_call.1} parent=0
    _
  %s11 = ssub.s32 1, %s9
  %s12 = scalar_select 0, %s11, %s9
  $region1: #{tpu_custom_call.1} parent=0
    #allocation2 [shape = 'u8[8192]{0}', space=vmem, size = 0x2000, scoped, tag = 'output window, operand 0']
    #allocation3 [shape = 's32[2]{0}', space=sflag, size = 0x8, scoped, tag = 'scoped memory for tpu_custom_call.1']
    #allocation4 [shape = 'u8[8192]{0}', space=vmem, size = 0x2000, scoped, tag = 'output window, operand 1']
    #allocation5 [shape = 's32[2]{0}', space=sflag, size = 0x8, scoped, tag = 'scoped memory for tpu_custom_call.1']
    %13 = vsyncpa [#allocation3], 0
    %s14 = scalar_lea.sflag [#allocation3], 1
    %15 = vsyncpa %s14, 0
    %16 = vsyncpa [#allocation5], 0
    %s17 = scalar_lea.sflag [#allocation5], 1
    %18 = vsyncpa %s17, 0
    loop: start=0, step=1, limit=10
    $region2: #{tpu_custom_call.1} parent=1 // loop_pre_header
      _
    $region3: #{tpu_custom_call.1} parent=1 // loop_header
      %s20 = sphi 0, %s24
      %p21 = scmp.ge.s32.totalorder %s20, 10
      %s27 = sphi 0, %s46
      %s28 = sphi 0, %s42
      %s29 = sphi 0, %s38
      %s30 = sphi 0, %s27
      %s31 = sphi 0, %s28
      %s32 = sphi 0, %s29
      %s33 = sphi 0, %s30
      %s34 = sphi 0, %s31
      %s35 = sphi 0, %s32
      %s49 = sphi 0, %s51
      %s52 = sphi 0, %s49
      %s53 = sphi 0, %s52
      %s69 = sphi 0, %s53
      %s75 = sphi 0, %s77
      %s78 = sphi 0, %s75
      %s79 = sphi 0, %s78
      %s95 = sphi 0, %s79
      %s101 = sphi 0, %s103
      %s104 = sphi 0, %s101
      %s105 = sphi 0, %s104
      %s121 = sphi 0, %s105
      %s127 = sphi 0, %s129
      %s130 = sphi 0, %s127
      %s131 = sphi 0, %s130
      %s147 = sphi 0, %s131
      %s155 = sphi 0, %s157
      %s158 = sphi 0, %s155
      %s159 = sphi 0, %s158
      %s175 = sphi 0, %s159
      %s183 = sphi 0, %s185
      %s186 = sphi 0, %s183
      %s187 = sphi 0, %s186
      %s203 = sphi 0, %s187
      %s213 = sphi 0, %s215
      %s216 = sphi 0, %s213
      %s217 = sphi 0, %s216
      %s233 = sphi 0, %s217
      %s243 = sphi 0, %s245
      %s246 = sphi 0, %s243
      %s247 = sphi 0, %s246
      %s263 = sphi 0, %s247
    $region4: #{tpu_custom_call.1} parent=1 // loop_header_branch
      %23 = sbr.rel (%p21) target = $region8
    $region5: #{tpu_custom_call.1} parent=1 // loop_body
      %s25 = ssub.s32 %s20, 1
      %s26 = ssub.s32 %s20, 2
      %s36 = sadd.s32 1, %s29
      %p37 = scmp.ge.s32.totalorder %s36, 1
      %s38 = scalar_select %p37, 0, %s36
      %s39 = sadd.s32 1, %s28
      %s40 = scalar_select %p37, %s39, %s28
      %p41 = scmp.ge.s32.totalorder %s40, 4
      %s42 = scalar_select %p41, 0, %s40
      %s43 = sadd.s32 1, %s27
      %s44 = scalar_select %p41, %s43, %s27
      %p45 = scmp.ge.s32.totalorder %s44, 2
      %s46 = scalar_select %p45, 0, %s44
      %s47 = ssub.s32 %s27, %s46
      %p48 = scmp.eq.s32.totalorder %s47, 0
      %s50 = sadd.s32 %s49, 1
      %s51 = scalar_select %p48, %s49, %s50
      %p54 = pneg %p48
      %p55 = scmp.eq.s32.totalorder %s20, 7
      %p56 = por %p54, %p55
      %p57 = scmp.ne.s32.totalorder %s49, %s52
      %p58 = scmp.eq.s32.totalorder %s20, 0
      %p59 = por %p57, %p58
      %p60 = scmp.ne.s32.totalorder %s49, %s52
      %p61 = scmp.eq.s32.totalorder %s25, 7
      %p62 = por %p60, %p61
      %p63 = scmp.ne.s32.totalorder %s52, %s53
      %p64 = scmp.eq.s32.totalorder %s25, 0
      %p65 = por %p63, %p64
      %p66 = scmp.ne.s32.totalorder %s52, %s53
      %p67 = scmp.eq.s32.totalorder %s26, 7
      %p68 = por %p66, %p67
      %p70 = scmp.ne.s32.totalorder %s53, %s69
      %p71 = scmp.eq.s32.totalorder %s26, 0
      %p72 = por %p70, %p71
      %s73 = ssub.s32 %s27, %s46
      %p74 = scmp.eq.s32.totalorder %s73, 0
      %s76 = sadd.s32 %s75, 1
      %s77 = scalar_select %p74, %s75, %s76
      %p80 = pneg %p74
      %p81 = scmp.eq.s32.totalorder %s20, 7
      %p82 = por %p80, %p81
      %p83 = scmp.ne.s32.totalorder %s75, %s78
      %p84 = scmp.eq.s32.totalorder %s20, 0
      %p85 = por %p83, %p84
      %p86 = scmp.ne.s32.totalorder %s75, %s78
      %p87 = scmp.eq.s32.totalorder %s25, 7
      %p88 = por %p86, %p87
      %p89 = scmp.ne.s32.totalorder %s78, %s79
      %p90 = scmp.eq.s32.totalorder %s25, 0
      %p91 = por %p89, %p90
      %p92 = scmp.ne.s32.totalorder %s78, %s79
      %p93 = scmp.eq.s32.totalorder %s26, 7
      %p94 = por %p92, %p93
      %p96 = scmp.ne.s32.totalorder %s79, %s95
      %p97 = scmp.eq.s32.totalorder %s26, 0
      %p98 = por %p96, %p97
      %s99 = ssub.s32 %s28, %s42
      %p100 = scmp.eq.s32.totalorder %s99, 0
      %s102 = sadd.s32 %s101, 1
      %s103 = scalar_select %p100, %s101, %s102
      %p106 = pneg %p100
      %p107 = scmp.eq.s32.totalorder %s20, 7
      %p108 = por %p106, %p107
      %p109 = scmp.ne.s32.totalorder %s101, %s104
      %p110 = scmp.eq.s32.totalorder %s20, 0
      %p111 = por %p109, %p110
      %p112 = scmp.ne.s32.totalorder %s101, %s104
      %p113 = scmp.eq.s32.totalorder %s25, 7
      %p114 = por %p112, %p113
      %p115 = scmp.ne.s32.totalorder %s104, %s105
      %p116 = scmp.eq.s32.totalorder %s25, 0
      %p117 = por %p115, %p116
      %p118 = scmp.ne.s32.totalorder %s104, %s105
      %p119 = scmp.eq.s32.totalorder %s26, 7
      %p120 = por %p118, %p119
      %p122 = scmp.ne.s32.totalorder %s105, %s121
      %p123 = scmp.eq.s32.totalorder %s26, 0
      %p124 = por %p122, %p123
      %s125 = ssub.s32 %s28, %s42
      %p126 = scmp.eq.s32.totalorder %s125, 0
      %s128 = sadd.s32 %s127, 1
      %s129 = scalar_select %p126, %s127, %s128
      %p132 = pneg %p126
      %p133 = scmp.eq.s32.totalorder %s20, 7
      %p134 = por %p132, %p133
      %p135 = scmp.ne.s32.totalorder %s127, %s130
      %p136 = scmp.eq.s32.totalorder %s20, 0
      %p137 = por %p135, %p136
      %p138 = scmp.ne.s32.totalorder %s127, %s130
      %p139 = scmp.eq.s32.totalorder %s25, 7
      %p140 = por %p138, %p139
      %p141 = scmp.ne.s32.totalorder %s130, %s131
      %p142 = scmp.eq.s32.totalorder %s25, 0
      %p143 = por %p141, %p142
      %p144 = scmp.ne.s32.totalorder %s130, %s131
      %p145 = scmp.eq.s32.totalorder %s26, 7
      %p146 = por %p144, %p145
      %p148 = scmp.ne.s32.totalorder %s131, %s147
      %p149 = scmp.eq.s32.totalorder %s26, 0
      %p150 = por %p148, %p149
      %s151 = ssub.s32 %s27, %s46
      %s152 = ssub.s32 %s28, %s42
      %s153 = sor.u32 %s151, %s152
      %p154 = scmp.eq.s32.totalorder %s153, 0
      %s156 = sadd.s32 %s155, 1
      %s157 = scalar_select %p154, %s155, %s156
      %p160 = pneg %p154
      %p161 = scmp.eq.s32.totalorder %s20, 7
      %p162 = por %p160, %p161
      %p163 = scmp.ne.s32.totalorder %s155, %s158
      %p164 = scmp.eq.s32.totalorder %s20, 0
      %p165 = por %p163, %p164
      %p166 = scmp.ne.s32.totalorder %s155, %s158
      %p167 = scmp.eq.s32.totalorder %s25, 7
      %p168 = por %p166, %p167
      %p169 = scmp.ne.s32.totalorder %s158, %s159
      %p170 = scmp.eq.s32.totalorder %s25, 0
      %p171 = por %p169, %p170
      %p172 = scmp.ne.s32.totalorder %s158, %s159
      %p173 = scmp.eq.s32.totalorder %s26, 7
      %p174 = por %p172, %p173
      %p176 = scmp.ne.s32.totalorder %s159, %s175
      %p177 = scmp.eq.s32.totalorder %s26, 0
      %p178 = por %p176, %p177
      %s179 = ssub.s32 %s27, %s46
      %s180 = ssub.s32 %s28, %s42
      %s181 = sor.u32 %s179, %s180
      %p182 = scmp.eq.s32.totalorder %s181, 0
      %s184 = sadd.s32 %s183, 1
      %s185 = scalar_select %p182, %s183, %s184
      %p188 = pneg %p182
      %p189 = scmp.eq.s32.totalorder %s20, 7
      %p190 = por %p188, %p189
      %p191 = scmp.ne.s32.totalorder %s183, %s186
      %p192 = scmp.eq.s32.totalorder %s20, 0
      %p193 = por %p191, %p192
      %p194 = scmp.ne.s32.totalorder %s183, %s186
      %p195 = scmp.eq.s32.totalorder %s25, 7
      %p196 = por %p194, %p195
      %p197 = scmp.ne.s32.totalorder %s186, %s187
      %p198 = scmp.eq.s32.totalorder %s25, 0
      %p199 = por %p197, %p198
      %p200 = scmp.ne.s32.totalorder %s186, %s187
      %p201 = scmp.eq.s32.totalorder %s26, 7
      %p202 = por %p200, %p201
      %p204 = scmp.ne.s32.totalorder %s187, %s203
      %p205 = scmp.eq.s32.totalorder %s26, 0
      %p206 = por %p204, %p205
      %s207 = ssub.s32 %s27, %s46
      %s208 = ssub.s32 %s28, %s42
      %s209 = sor.u32 %s207, %s208
      %s210 = ssub.s32 %s29, %s38
      %s211 = sor.u32 %s209, %s210
      %p212 = scmp.eq.s32.totalorder %s211, 0
      %s214 = sadd.s32 %s213, 1
      %s215 = scalar_select %p212, %s213, %s214
      %p218 = pneg %p212
      %p219 = scmp.eq.s32.totalorder %s20, 7
      %p220 = por %p218, %p219
      %p221 = scmp.ne.s32.totalorder %s213, %s216
      %p222 = scmp.eq.s32.totalorder %s20, 0
      %p223 = por %p221, %p222
      %p224 = scmp.ne.s32.totalorder %s213, %s216
      %p225 = scmp.eq.s32.totalorder %s25, 7
      %p226 = por %p224, %p225
      %p227 = scmp.ne.s32.totalorder %s216, %s217
      %p228 = scmp.eq.s32.totalorder %s25, 0
      %p229 = por %p227, %p228
      %p230 = scmp.ne.s32.totalorder %s216, %s217
      %p231 = scmp.eq.s32.totalorder %s26, 7
      %p232 = por %p230, %p231
      %p234 = scmp.ne.s32.totalorder %s217, %s233
      %p235 = scmp.eq.s32.totalorder %s26, 0
      %p236 = por %p234, %p235
      %s237 = ssub.s32 %s27, %s46
      %s238 = ssub.s32 %s28, %s42
      %s239 = sor.u32 %s237, %s238
      %s240 = ssub.s32 %s29, %s38
      %s241 = sor.u32 %s239, %s240
      %p242 = scmp.eq.s32.totalorder %s241, 0
      %s244 = sadd.s32 %s243, 1
      %s245 = scalar_select %p242, %s243, %s244
      %p248 = pneg %p242
      %p249 = scmp.eq.s32.totalorder %s20, 7
      %p250 = por %p248, %p249
      %p251 = scmp.ne.s32.totalorder %s243, %s246
      %p252 = scmp.eq.s32.totalorder %s20, 0
      %p253 = por %p251, %p252
      %p254 = scmp.ne.s32.totalorder %s243, %s246
      %p255 = scmp.eq.s32.totalorder %s25, 7
      %p256 = por %p254, %p255
      %p257 = scmp.ne.s32.totalorder %s246, %s247
      %p258 = scmp.eq.s32.totalorder %s25, 0
      %p259 = por %p257, %p258
      %p260 = scmp.ne.s32.totalorder %s246, %s247
      %p261 = scmp.eq.s32.totalorder %s26, 7
      %p262 = por %p260, %p261
      %p264 = scmp.ne.s32.totalorder %s247, %s263
      %p265 = scmp.eq.s32.totalorder %s26, 0
      %p266 = por %p264, %p265
      %p267 = scmp.le.s32.totalorder 1, %s20
      %p268 = scmp.lt.s32.totalorder %s20, 9
      %p269 = pnand %p267, %p268
      %p270 = pneg %p269
      // Predicated region
      $region9: #{tpu_custom_call.1} parent=5 // pred_check
        _
      $region10: #{tpu_custom_call.1} parent=5 // pred_check_branch
        %272 = sbr.rel (%p269) target = $region12
      $region11: #{tpu_custom_call.1} parent=5 // pred_region
        %s273 = ssub.s32 %s20, 1
      $region12: #{tpu_custom_call.1} parent=5 // pred_fallthru
        _
      %p274 = scmp.lt.s32.totalorder %s20, 8
      // Predicated region
      $region13: #{tpu_custom_call.1} parent=5 // pred_check
        %p275 = pneg %p274
      $region14: #{tpu_custom_call.1} parent=5 // pred_check_branch
        %277 = sbr.rel (%p275) target = $region16
      $region15: #{tpu_custom_call.1} parent=5 // pred_region
        // Predicated region
        $region17: #{tpu_custom_call.1} parent=15 // pred_check
          %p278 = pneg %p59
        $region18: #{tpu_custom_call.1} parent=15 // pred_check_branch
          %280 = sbr.rel (%p278) target = $region20
        $region19: #{tpu_custom_call.1} parent=15 // pred_region
          %p281 = scmp.lt.s32.totalorder %s27, 1
          %s282 = scalar_select %p281, %s27, 1
          %s283 = smul.addr %s282, 4
          %s284 = scalar_lea.vmem %s0, %s283
        $region20: #{tpu_custom_call.1} parent=15 // pred_fallthru
          _
        // Predicated region
        $region21: #{tpu_custom_call.1} parent=15 // pred_check
          %p285 = pneg %p85
        $region22: #{tpu_custom_call.1} parent=15 // pred_check_branch
          %287 = sbr.rel (%p285) target = $region24
        $region23: #{tpu_custom_call.1} parent=15 // pred_region
          %p288 = scmp.lt.s32.totalorder %s27, 1
          %s289 = scalar_select %p288, %s27, 1
          %s290 = scalar_lea.vmem %s1, %s289
        $region24: #{tpu_custom_call.1} parent=15 // pred_fallthru
          _
        // Predicated region
        $region25: #{tpu_custom_call.1} parent=15 // pred_check
          %p291 = pneg %p111
        $region26: #{tpu_custom_call.1} parent=15 // pred_check_branch
          %293 = sbr.rel (%p291) target = $region28
        $region27: #{tpu_custom_call.1} parent=15 // pred_region
          %p294 = scmp.lt.s32.totalorder %s28, 3
          %s295 = scalar_select %p294, %s28, 3
          %s296 = smul.addr %s295, 4
          %s297 = smul.addr %s296, 4
          %s298 = scalar_lea.vmem %s2, %s297
        $region28: #{tpu_custom_call.1} parent=15 // pred_fallthru
          _
        // Predicated region
        $region29: #{tpu_custom_call.1} parent=15 // pred_check
          %p299 = pneg %p137
        $region30: #{tpu_custom_call.1} parent=15 // pred_check_branch
          %301 = sbr.rel (%p299) target = $region32
        $region31: #{tpu_custom_call.1} parent=15 // pred_region
          %p302 = scmp.lt.s32.totalorder %s28, 3
          %s303 = scalar_select %p302, %s28, 3
          %s304 = scalar_lea.vmem %s3, %s303
        $region32: #{tpu_custom_call.1} parent=15 // pred_fallthru
          _
        // Predicated region
        $region33: #{tpu_custom_call.1} parent=15 // pred_check
          %p305 = pneg %p165
        $region34: #{tpu_custom_call.1} parent=15 // pred_check_branch
          %307 = sbr.rel (%p305) target = $region36
        $region35: #{tpu_custom_call.1} parent=15 // pred_region
          %p308 = scmp.lt.s32.totalorder %s27, 1
          %s309 = scalar_select %p308, %s27, 1
          %p310 = scmp.lt.s32.totalorder %s28, 3
          %s311 = scalar_select %p310, %s28, 3
          %s312 = smul.addr %s309, 4
          %s313 = sadd.s32 %s311, %s312
          %s314 = smul.addr %s313, 4
          %s315 = scalar_lea.vmem %s4, %s314
        $region36: #{tpu_custom_call.1} parent=15 // pred_fallthru
          _
        // Predicated region
        $region37: #{tpu_custom_call.1} parent=15 // pred_check
          %p316 = pneg %p193
        $region38: #{tpu_custom_call.1} parent=15 // pred_check_branch
          %318 = sbr.rel (%p316) target = $region40
        $region39: #{tpu_custom_call.1} parent=15 // pred_region
          %p319 = scmp.lt.s32.totalorder %s27, 1
          %s320 = scalar_select %p319, %s27, 1
          %p321 = scmp.lt.s32.totalorder %s28, 3
          %s322 = scalar_select %p321, %s28, 3
          %s323 = smul.addr %s320, 4
          %s324 = sadd.s32 %s322, %s323
          %s325 = smul.addr %s324, 4
          %s326 = scalar_lea.vmem %s5, %s325
        $region40: #{tpu_custom_call.1} parent=15 // pred_fallthru
          _
      $region16: #{tpu_custom_call.1} parent=5 // pred_fallthru
        _
      %p327 = scmp.le.s32.totalorder 1, %s20
      %p328 = scmp.lt.s32.totalorder %s20, 9
      %p329 = pnand %p327, %p328
      %p330 = pneg %p329
      // Predicated region
      $region41: #{tpu_custom_call.1} parent=5 // pred_check
        _
      $region42: #{tpu_custom_call.1} parent=5 // pred_check_branch
        %332 = sbr.rel (%p329) target = $region44
      $region43: #{tpu_custom_call.1} parent=5 // pred_region
        %s333 = ssub.s32 %s20, 1
        %p334 = scmp.lt.s32.totalorder %s30, 1
        %s335 = scalar_select %p334, %s30, 1
        %s336 = smul.addr %s335, 4
        %s337 = scalar_lea.vmem %s0, %s336
        %p338 = pneg %p65
        %p339 = pneg %p62
        %p340 = scmp.lt.s32.totalorder %s30, 1
        %s341 = scalar_select %p340, %s30, 1
        %s342 = scalar_lea.vmem %s1, %s341
        %p343 = pneg %p91
        %p344 = pneg %p88
        %p345 = scmp.lt.s32.totalorder %s31, 3
        %s346 = scalar_select %p345, %s31, 3
        %s347 = smul.addr %s346, 4
        %s348 = smul.addr %s347, 4
        %s349 = scalar_lea.vmem %s2, %s348
        %p350 = pneg %p117
        %p351 = pneg %p114
        %p352 = scmp.lt.s32.totalorder %s31, 3
        %s353 = scalar_select %p352, %s31, 3
        %s354 = scalar_lea.vmem %s3, %s353
        %p355 = pneg %p143
        %p356 = pneg %p140
        %p357 = scmp.lt.s32.totalorder %s30, 1
        %s358 = scalar_select %p357, %s30, 1
        %p359 = scmp.lt.s32.totalorder %s31, 3
        %s360 = scalar_select %p359, %s31, 3
        %s361 = smul.addr %s358, 4
        %s362 = sadd.s32 %s360, %s361
        %s363 = smul.addr %s362, 4
        %s364 = scalar_lea.vmem %s4, %s363
        %p365 = pneg %p171
        %p366 = pneg %p168
        %p367 = scmp.lt.s32.totalorder %s30, 1
        %s368 = scalar_select %p367, %s30, 1
        %p369 = scmp.lt.s32.totalorder %s31, 3
        %s370 = scalar_select %p369, %s31, 3
        %s371 = smul.addr %s368, 4
        %s372 = sadd.s32 %s370, %s371
        %s373 = smul.addr %s372, 4
        %s374 = scalar_lea.vmem %s5, %s373
        %p375 = pneg %p199
        %p376 = pneg %p196
        %p377 = pneg %p229
        %p378 = pneg %p226
        %s379 = sand.u32 %s216, 1
        %s380 = scalar_lea.sflag [#allocation3], %s379
        %s381 = sand.u32 %s216, 1
        %s382 = smul.addr %s381, 8
        %s383 = scalar_lea.vmem [#allocation2], %s382
        %p384 = pneg %p259
        %p385 = pneg %p256
        %s386 = sand.u32 %s246, 1
        %s387 = scalar_lea.sflag [#allocation5], %s386
        %s388 = sand.u32 %s246, 1
        %s389 = smul.addr %s388, 8
        %s390 = scalar_lea.vmem [#allocation4], %s389
        %p391 = scmp.lt.s32.totalorder %s30, 1
        %s392 = scalar_select %p391, %s30, 1
        %s393 = smul.addr %s392, 4
        %s394 = scalar_lea.vmem %s0, %s393
        %p395 = scmp.lt.s32.totalorder %s30, 1
        %s396 = scalar_select %p395, %s30, 1
        %s397 = scalar_lea.vmem %s1, %s396
        %p398 = scmp.lt.s32.totalorder %s31, 3
        %s399 = scalar_select %p398, %s31, 3
        %s400 = smul.addr %s399, 4
        %s401 = smul.addr %s400, 4
        %s402 = scalar_lea.vmem %s2, %s401
        %p403 = scmp.lt.s32.totalorder %s31, 3
        %s404 = scalar_select %p403, %s31, 3
        %s405 = scalar_lea.vmem %s3, %s404
        %p406 = scmp.lt.s32.totalorder %s30, 1
        %s407 = scalar_select %p406, %s30, 1
        %p408 = scmp.lt.s32.totalorder %s31, 3
        %s409 = scalar_select %p408, %s31, 3
        %s410 = smul.addr %s407, 4
        %s411 = sadd.s32 %s409, %s410
        %s412 = smul.addr %s411, 4
        %s413 = scalar_lea.vmem %s4, %s412
        %p414 = scmp.lt.s32.totalorder %s30, 1
        %s415 = scalar_select %p414, %s30, 1
        %p416 = scmp.lt.s32.totalorder %s31, 3
        %s417 = scalar_select %p416, %s31, 3
        %s418 = smul.addr %s415, 4
        %s419 = sadd.s32 %s417, %s418
        %s420 = smul.addr %s419, 4
        %s421 = scalar_lea.vmem %s5, %s420
        %s423 = smul.u32 %s32, 8
        %s424 = sshra.s32 %s423, 3
        %s425 = sand.u32 %s423, 7
        %s426 = smul.addr %s424, 4
        %s427 = scalar_lea.vmem %s394, %s426
        %v428 = vld [vmem:[%s427] sm:$0xf]
        %v429 = vld [vmem:[%s402] sm:$0xf]
        %v430 = vld [vmem:[%s402 + $0x4] sm:$0xf]
        %v431 = vld [vmem:[%s402 + $0x8] sm:$0xf]
        %v432 = vld [vmem:[%s402 + $0xc] sm:$0xf]
        %v433 = vld [vmem:[%s405] sm:$0x1]
        %v435 = vlaneseq
        %v436 = vshrl.u32 %v435, 7
        %v437 = vsub.s32 0, %v436
        %v438 = vrot.slane %v433, %v437
        %v444 = vunpack.c.l.b16 %v429
        %v445 = vunpack.c.l.b16 %v430
        %v446 = vunpack.c.l.b16 %v431
        %v447 = vunpack.c.l.b16 %v432
        %v448 = vpack.c.b16 %v445, %v444
        %v449 = vpack.c.b16 %v447, %v446
        %vm452 = vcmask 261120
        %v454 = vsel %vm452, %v428, 0
        %456 = vmatprep.subr.bf16.mxu0 0
        %457 = vmatpush1.bf16.msra.mxu0 %v448
        %458 = vmatprep.subr.bf16.mxu0 0
        %459 = vmatpush1.bf16.msra.mxu0 %v449
        %460 = vmatprep.subr.bf16.mxu0 0
        %461 = vmatpush1.bf16.msra.mxu0 0
        %462 = vmatprep.subr.bf16.mxu0 0
        %463 = vmatpush1.bf16.msra.mxu0 0
        %464 = vmatprep.subr.bf16.mxu0 0
        %465 = vmatpush1.bf16.msra.mxu0 0
        %466 = vmatprep.subr.bf16.mxu0 0
        %467 = vmatpush1.bf16.msra.mxu0 0
        %468 = vmatprep.subr.bf16.mxu0 0
        %469 = vmatpush1.bf16.msra.mxu0 0
        %470 = vmatprep.subr.bf16.mxu0 0
        %471 = vmatpush1.bf16.msra.mxu0 0
        %472 = vmatprep.subr.bf16.mxu0 0
        %473 = vmatpush1.bf16.msra.mxu0 0
        %474 = vmatprep.subr.bf16.mxu0 0
        %475 = vmatpush1.bf16.msra.mxu0 0
        %476 = vmatprep.subr.bf16.mxu0 0
        %477 = vmatpush1.bf16.msra.mxu0 0
        %478 = vmatprep.subr.bf16.mxu0 0
        %479 = vmatpush1.bf16.msra.mxu0 0
        %480 = vmatprep.subr.bf16.mxu0 0
        %481 = vmatpush1.bf16.msra.mxu0 0
        %482 = vmatprep.subr.bf16.mxu0 0
        %483 = vmatpush1.bf16.msra.mxu0 0
        %484 = vmatprep.subr.bf16.mxu0 0
        %485 = vmatpush1.bf16.msra.mxu0 0
        %486 = vmatprep.subr.bf16.mxu0 0
        %487 = vmatpush1.bf16.msra.mxu0 0
        %488 = vmatprep.mubr.bf16.mxu0 0
        %489 = vmatmul.mubr.bf16.gmra.mrb[0].mxu0 %v454
        %v490 = vpop.f32.mrb[0].mxu0
        %v491 = vadd.f32 %v438, %v490
        %v492 = vpop.f32.mrb[0].mxu0
        %v493 = vpop.f32.mrb[0].mxu0
        %v494 = vpop.f32.mrb[0].mxu0
        %495 = vdwg.mxu0
        %v496 = vpack.c.bf16 %v491, %v491
        %v497 = vld [vmem:[%s413] sm:$0xf]
        %v498 = vld [vmem:[%s421] sm:$0xf]
        %vm499 = vcmask 64512
        %v501 = vsel %vm499, %v496, 0
        %v504 = vsel %vm499, %v497, 0
        %506 = vmatprep.subr.bf16.mxu0 0
        %507 = vmatpush1.bf16.xpose.msra.mxu0 %v504
        %508 = vmatprep.subr.bf16.mxu0 0
        %509 = vmatpush1.bf16.xpose.msra.mxu0 0
        %510 = vmatprep.subr.bf16.mxu0 0
        %511 = vmatpush1.bf16.xpose.msra.mxu0 0
        %512 = vmatprep.subr.bf16.mxu0 0
        %513 = vmatpush1.bf16.xpose.msra.mxu0 0
        %514 = vmatprep.subr.bf16.mxu0 0
        %515 = vmatpush1.bf16.xpose.msra.mxu0 0
        %516 = vmatprep.subr.bf16.mxu0 0
        %517 = vmatpush1.bf16.xpose.msra.mxu0 0
        %518 = vmatprep.subr.bf16.mxu0 0
        %519 = vmatpush1.bf16.xpose.msra.mxu0 0
        %520 = vmatprep.subr.bf16.mxu0 0
        %521 = vmatpush1.bf16.xpose.msra.mxu0 0
        %522 = vmatprep.subr.bf16.mxu0 0
        %523 = vmatpush1.bf16.xpose.msra.mxu0 0
        %524 = vmatprep.subr.bf16.mxu0 0
        %525 = vmatpush1.bf16.xpose.msra.mxu0 0
        %526 = vmatprep.subr.bf16.mxu0 0
        %527 = vmatpush1.bf16.xpose.msra.mxu0 0
        %528 = vmatprep.subr.bf16.mxu0 0
        %529 = vmatpush1.bf16.xpose.msra.mxu0 0
        %530 = vmatprep.subr.bf16.mxu0 0
        %531 = vmatpush1.bf16.xpose.msra.mxu0 0
        %532 = vmatprep.subr.bf16.mxu0 0
        %533 = vmatpush1.bf16.xpose.msra.mxu0 0
        %534 = vmatprep.subr.bf16.mxu0 0
        %535 = vmatpush1.bf16.xpose.msra.mxu0 0
        %536 = vmatprep.subr.bf16.mxu0 0
        %537 = vmatpush1.bf16.xpose.msra.mxu0 0
        %538 = vmatprep.mubr.bf16.mxu0 0
        %539 = vmatmul.mubr.bf16.gmra.mrb[0].mxu0 %v501
        %v540 = vpop.f32.mrb[0].mxu0
        %v541 = vadd.f32 0.0, %v540
        %v542 = vpop.f32.mrb[0].mxu0
        %v543 = vpop.f32.mrb[0].mxu0
        %v544 = vpop.f32.mrb[0].mxu0
        %545 = vdwg.mxu0
        %v546 = vlaneseq
        %v547 = vshrl.u32 %v546, 7
        %v548 = vstv %s423
        %v549 = vadd.s32 %v547, %v548
        %v550 = vlaneseq
        %v551 = vand.u32 %v550, 127
        %v552 = vsub.s32 %v551, 2
        %vm553 = vcmp.le.s32.totalorder %v552, %v549
        %v554 = vld [vmem:[%s397] sm:$0x1]
        %vm555 = vcmp.ne.f32.partialorder %v554, 0.0
        %v556 = vsel %vm555, 1, 0
        %v557 = vlaneseq
        %v558 = vshrl.u32 %v557, 7
        %v559 = vsub.s32 0, %v558
        %v560 = vrot.slane %v556, %v559
        %vm561 = vcmp.eq.s32.totalorder %v560, 1
        %vm562 = vmand %vm553, %vm561
        %v563 = vsel %vm562, %v541, -1e+20
        %v564 = vsel %vm499, %v563, -inf
        %565 = vmax.xlane.f32.xlu0 %v564
        %v566 = vpop.xlane.xlu0 %565
        %v567 = vsub.f32 %v563, %v566
        %v568 = vmul.f32 %v567, 1.442695
        %v569 = vpow.pop %v568
        %v570 = vsel %vm499, %v569, 0.0
        %571 = vadd.xlane.f32.xlu0 %v570
        %v572 = vpop.xlane.xlu0 %571
        %v573 = vrcp.pop %v572
        %v574 = vmul.f32 %v569, %v573
        %575 = vst.msk [vmem:[%s390] sm:$0xff] %vm499, %v574
        %v576 = vpack.c.bf16 %v574, %v574
        %v578 = vsel %vm499, %v576, 0
        %vm580 = vcmask 1043456
        %v582 = vsel %vm580, %v498, 0
        %584 = vmatprep.subr.bf16.mxu0 0
        %585 = vmatpush1.bf16.msra.mxu0 %v582
        %586 = vmatprep.subr.bf16.mxu0 0
        %587 = vmatpush1.bf16.msra.mxu0 0
        %588 = vmatprep.subr.bf16.mxu0 0
        %589 = vmatpush1.bf16.msra.mxu0 0
        %590 = vmatprep.subr.bf16.mxu0 0
        %591 = vmatpush1.bf16.msra.mxu0 0
        %592 = vmatprep.subr.bf16.mxu0 0
        %593 = vmatpush1.bf16.msra.mxu0 0
        %594 = vmatprep.subr.bf16.mxu0 0
        %595 = vmatpush1.bf16.msra.mxu0 0
        %596 = vmatprep.subr.bf16.mxu0 0
        %597 = vmatpush1.bf16.msra.mxu0 0
        %598 = vmatprep.subr.bf16.mxu0 0
        %599 = vmatpush1.bf16.msra.mxu0 0
        %600 = vmatprep.subr.bf16.mxu0 0
        %601 = vmatpush1.bf16.msra.mxu0 0
        %602 = vmatprep.subr.bf16.mxu0 0
        %603 = vmatpush1.bf16.msra.mxu0 0
        %604 = vmatprep.subr.bf16.mxu0 0
        %605 = vmatpush1.bf16.msra.mxu0 0
        %606 = vmatprep.subr.bf16.mxu0 0
        %607 = vmatpush1.bf16.msra.mxu0 0
        %608 = vmatprep.subr.bf16.mxu0 0
        %609 = vmatpush1.bf16.msra.mxu0 0
        %610 = vmatprep.subr.bf16.mxu0 0
        %611 = vmatpush1.bf16.msra.mxu0 0
        %612 = vmatprep.subr.bf16.mxu0 0
        %613 = vmatpush1.bf16.msra.mxu0 0
        %614 = vmatprep.subr.bf16.mxu0 0
        %615 = vmatpush1.bf16.msra.mxu0 0
        %616 = vmatprep.mubr.bf16.mxu0 0
        %617 = vmatmul.mubr.bf16.gmra.mrb[0].mxu0 %v578
        %v618 = vpop.f32.mrb[0].mxu0
        %v619 = vadd.f32 0.0, %v618
        %v620 = vpop.f32.mrb[0].mxu0
        %v621 = vpop.f32.mrb[0].mxu0
        %v622 = vpop.f32.mrb[0].mxu0
        %623 = vdwg.mxu0
        %624 = vst.msk [vmem:[%s383] sm:$0xff] %vm499, %v619
        %s625 = sand.u32 %s216, 1
        %s626 = scalar_lea.sflag [#allocation3], %s625
        %s627 = sand.u32 %s216, 1
        %s628 = smul.addr %s627, 8
        %s629 = scalar_lea.vmem [#allocation2], %s628
        %s630 = sand.u32 %s246, 1
        %s631 = scalar_lea.sflag [#allocation5], %s630
        %s632 = sand.u32 %s246, 1
        %s633 = smul.addr %s632, 8
        %s634 = scalar_lea.vmem [#allocation4], %s633
        // Predicated region
        $region45: #{tpu_custom_call.1} parent=43 // pred_check
          %p635 = pneg %p226
        $region46: #{tpu_custom_call.1} parent=43 // pred_check_branch
          %637 = sbr.rel (%p635) target = $region48
        $region47: #{tpu_custom_call.1} parent=43 // pred_region
          %s639 = ssub.s32 128, 128
          %640 = vsyncadd %s626, %s639
          %s641 = sadd.s32 %s32, %s31
          %s642 = smul.addr %s30, 4
          %s643 = sadd.s32 %s641, %s642
          %s644 = smul.addr %s643, 128
          %s645 = scalar_lea.hbm %s6, %s644
          %s647 = sshll.u32 %s629, 4
          %s648 = int_to_ptr.vmem [resolvable:$true] %s647
          %650 = dma.vmem_to_hbm [thread:$0]  %s648, 128, %s645, %s626
        $region48: #{tpu_custom_call.1} parent=43 // pred_fallthru
          _
        // Predicated region
        $region49: #{tpu_custom_call.1} parent=43 // pred_check
          %p651 = pneg %p256
        $region50: #{tpu_custom_call.1} parent=43 // pred_check_branch
          %653 = sbr.rel (%p651) target = $region52
        $region51: #{tpu_custom_call.1} parent=43 // pred_region
          %s655 = ssub.s32 128, 128
          %656 = vsyncadd %s631, %s655
          %s657 = sadd.s32 %s32, %s31
          %s658 = smul.addr %s30, 4
          %s659 = sadd.s32 %s657, %s658
          %s660 = smul.addr %s659, 128
          %s661 = scalar_lea.hbm %s7, %s660
          %s663 = sshll.u32 %s634, 4
          %s664 = int_to_ptr.vmem [resolvable:$true] %s663
          %666 = dma.vmem_to_hbm [thread:$0]  %s664, 128, %s661, %s631
        $region52: #{tpu_custom_call.1} parent=43 // pred_fallthru
          _
      $region44: #{tpu_custom_call.1} parent=5 // pred_fallthru
        _
      %p667 = scmp.le.s32.totalorder 2, %s20
      // Predicated region
      $region53: #{tpu_custom_call.1} parent=5 // pred_check
        %p668 = pneg %p667
      $region54: #{tpu_custom_call.1} parent=5 // pred_check_branch
        %670 = sbr.rel (%p668) target = $region56
      $region55: #{tpu_custom_call.1} parent=5 // pred_region
        %s671 = ssub.s32 %s20, 2
        // Predicated region
        $region57: #{tpu_custom_call.1} parent=55 // pred_check
          %p672 = pneg %p232
        $region58: #{tpu_custom_call.1} parent=55 // pred_check_branch
          %674 = sbr.rel (%p672) target = $region60
        $region59: #{tpu_custom_call.1} parent=55 // pred_region
          %s675 = sand.u32 %s217, 1
          %s676 = scalar_lea.sflag [#allocation3], %s675
          %s677 = sand.u32 %s217, 1
          %s678 = smul.addr %s677, 8
          %s679 = scalar_lea.vmem [#allocation2], %s678
          %680 = dma.done %s676, 128
        $region60: #{tpu_custom_call.1} parent=55 // pred_fallthru
          _
        // Predicated region
        $region61: #{tpu_custom_call.1} parent=55 // pred_check
          %p681 = pneg %p262
        $region62: #{tpu_custom_call.1} parent=55 // pred_check_branch
          %683 = sbr.rel (%p681) target = $region64
        $region63: #{tpu_custom_call.1} parent=55 // pred_region
          %s684 = sand.u32 %s247, 1
          %s685 = scalar_lea.sflag [#allocation5], %s684
          %s686 = sand.u32 %s247, 1
          %s687 = smul.addr %s686, 8
          %s688 = scalar_lea.vmem [#allocation4], %s687
          %689 = dma.done %s685, 128
        $region64: #{tpu_custom_call.1} parent=55 // pred_fallthru
          _
      $region56: #{tpu_custom_call.1} parent=5 // pred_fallthru
        _
    $region6: #{tpu_custom_call.1} parent=1 // loop_footer
      %s24 = sadd.s32 1, %s20
    $region7: #{tpu_custom_call.1} parent=1 // loop_footer_branch
      %19 = sbr.rel target = $region3
    $region8: #{tpu_custom_call.1} parent=1 // loop_exit
      _
    %690 = vsyncpa [#allocation3], 1
    %s691 = scalar_lea.sflag [#allocation3], 1
    %692 = vsyncpa %s691, 1
    %693 = vsyncpa [#allocation5], 1
    %s694 = scalar_lea.sflag [#allocation5], 1
    %695 = vsyncpa %s694, 1

</llo_original>
